<compile_context>
chip_gen: v7x
topology: tpu7x:2x2x1
jax: 0.10.0
libtpu: 0.0.40
codegen_flags: <defaults>
</compile_context>

<pallas_src>
import jax
import jax.numpy as jnp
from jax.experimental import pallas as pl
from jax.experimental.pallas import tpu as pltpu

_MIB = 1024 * 1024


def _round_up(x, m):
    return ((x + m - 1) // m) * m


def _vmem_budget_cap():
    """Usable VMEM budget (bytes) on the current chip, with compiler headroom."""
    try:
        cap = int(pltpu.get_tpu_info().vmem_capacity_bytes)
    except Exception:
        cap = 64 * _MIB  # conservative fallback: v7x per-core VMEM
    return int(cap * 0.8)


def _pick_tn(n_pad, pref=256):
    """Pick a lane-aligned N tile that divides the (128-padded) output width."""
    if n_pad <= pref:
        return n_pad
    if n_pad % pref == 0:
        return pref
    return 128  # n_pad is always a multiple of 128


def _const_spec(shape, index_map):
    """BlockSpec for a block whose index never changes: single-buffer it."""
    try:
        return pl.BlockSpec(shape, index_map, pipeline_mode=pl.Buffered(1))
    except Exception:  # older jax without pipeline_mode / Buffered
        return pl.BlockSpec(shape, index_map)


def _make_abba_kernel(compute_dtype, hoist_s):
    if hoist_s:
        def kernel(x_ref, w0t_ref, bias_ref, astar_t_ref, bstar_t_ref, y_ref,
                   s_ref):
            x = x_ref[...].astype(compute_dtype)

            @pl.when(pl.program_id(1) == 0)
            def _():
                # Rank projection computed once per M tile, reused for all N
                # tiles (j axis is "arbitrary" so the scratch is coherent).
                # Note: s is rounded to the compute dtype before the second
                # matmul (covered by the test tolerance).
                s_ref[...] = jnp.dot(
                    x, astar_t_ref[...],
                    preferred_element_type=jnp.float32).astype(s_ref.dtype)

            y = jnp.dot(x, w0t_ref[...], preferred_element_type=jnp.float32)
            y = y + jnp.dot(s_ref[...], bstar_t_ref[...],
                            preferred_element_type=jnp.float32)
            y = y + bias_ref[...]                 # bias kept in f32
            y_ref[...] = y.astype(y_ref.dtype)    # single lane-dense store
    else:
        def kernel(x_ref, w0t_ref, bias_ref, astar_t_ref, bstar_t_ref, y_ref):
            x = x_ref[...].astype(compute_dtype)
            s = jnp.dot(x, astar_t_ref[...], preferred_element_type=jnp.float32)
            y = jnp.dot(x, w0t_ref[...], preferred_element_type=jnp.float32)
            y = y + jnp.dot(s.astype(compute_dtype), bstar_t_ref[...],
                            preferred_element_type=jnp.float32)
            y = y + bias_ref[...]
            y_ref[...] = y.astype(y_ref.dtype)
    return kernel


def prepare_abba_params(w0, bias, a1, b1, a2, b2, alpha1, alpha2,
                        compute_dtype=jnp.bfloat16):
    """One-time parameter glue (hoisted out of the per-call hot path):
    Khatri-Rao factor construction, transposes, rank/out padding to 128 lanes,
    dtype casts.

    Returns (w0_t, bias2d, astar_t, bstar_t, out_features) with shapes
      w0_t    (in,    N_pad)  compute_dtype
      bias2d  (1,     N_pad)  float32
      astar_t (in,    R_pad)  compute_dtype
      bstar_t (R_pad, N_pad)  compute_dtype
    """
    out_features, in_features = w0.shape
    r1 = b1.shape[1]
    r2 = b2.shape[1]
    s1 = jnp.sqrt(jnp.asarray(alpha1, jnp.float32))
    s2 = jnp.sqrt(jnp.asarray(alpha2, jnp.float32))

    b1s = b1.astype(jnp.float32) * s1
    b2s = b2.astype(jnp.float32) * s2
    # B_star[d, i*r2 + j] = (B1*s1)[d, i] * (B2*s2)[d, j]   -> (out, R)
    B_star = (b1s[:, :, None] * b2s[:, None, :]).reshape(out_features, r1 * r2)
    # A_star[i*r2 + j, :] = A1[i, :] * A2[j, :]             -> (R, in)
    A_star = (a1.astype(jnp.float32)[:, None, :] *
              a2.astype(jnp.float32)[None, :, :]).reshape(r1 * r2, in_features)

    R = r1 * r2
    R_pad = _round_up(R, 128)                 # lane-dense rank
    N_pad = _round_up(out_features, 128)      # lane-dense output width

    astar_t = jnp.transpose(A_star)           # (in, R)
    bstar_t = jnp.transpose(B_star)           # (R, out)
    w0_t = jnp.transpose(w0)                  # (in, out)
    astar_t = jnp.pad(astar_t, ((0, 0), (0, R_pad - R)))
    bstar_t = jnp.pad(bstar_t, ((0, R_pad - R), (0, N_pad - out_features)))
    w0_t = jnp.pad(w0_t, ((0, 0), (0, N_pad - out_features)))

    if bias is None:
        bias2d = jnp.zeros((1, N_pad), jnp.float32)
    else:
        bias2d = jnp.pad(bias.reshape(1, out_features).astype(jnp.float32),
                         ((0, 0), (0, N_pad - out_features)))

    return (w0_t.astype(compute_dtype), bias2d,
            astar_t.astype(compute_dtype), bstar_t.astype(compute_dtype),
            out_features)


def abba_forward_prepared(x, w0_t, bias2d, astar_t, bstar_t, out_features=None,
                          *, tm=512, tn=None):
    """Run the fused ABBA kernel with pre-prepared (transposed/padded) params."""
    in_features, n_pad = w0_t.shape
    if out_features is None:
        out_features = n_pad
    r_pad = astar_t.shape[1]
    compute_dtype = w0_t.dtype

    orig_shape = x.shape
    x2d = x.reshape(-1, in_features)     # original dtype; cast happens in-kernel
    m = x2d.shape[0]

    if tn is None:
        tn = _pick_tn(n_pad)
    assert n_pad % tn == 0
    grid_n = n_pad // tn

    x_bytes = jnp.dtype(x.dtype).itemsize
    cd_bytes = jnp.dtype(compute_dtype).itemsize
    out_bytes = jnp.dtype(x.dtype).itemsize

    vmem_cap = _vmem_budget_cap()

    def tile_budget(tm_):
        return (tm_ * in_features * x_bytes * 2         # x tile (double-buffered)
                + in_features * tn * cd_bytes * 2       # W0^T panel
                + tn * 4 * 2                            # bias panel (f32, tiny)
                + in_features * r_pad * cd_bytes * 1    # A*^T (single-buffered)
                + r_pad * tn * cd_bytes * 2             # B*^T panel
                + tm_ * tn * out_bytes * 2              # y tile
                + tm_ * r_pad * cd_bytes)               # s scratch

    # M tiling: clamp for small M, then shrink tm until the tile budget fits
    # the chip's real VMEM (v7x: 64 MiB; v5e/v6e: 128 MiB).
    tm_eff = max(16, _round_up(min(tm, _round_up(m, 16)), 16))
    while tm_eff > 16 and tile_budget(tm_eff) > vmem_cap:
        tm_eff = max(16, _round_up(tm_eff // 2, 16))
    grid_m = pl.cdiv(m, tm_eff)   # boundary block masks the ragged tail rows

    # Hoist s = x @ A*^T out of the inner-N loop only when there is an N loop
    # to amortize it over AND more than one M tile (so v7x megacore still has
    # the "parallel" i axis to split).  Decode-sized calls keep both axes
    # parallel and recompute s (cheap at that size).
    hoist_s = (grid_n > 1) and (grid_m >= 2)
    dims = ("parallel", "arbitrary") if hoist_s else ("parallel", "parallel")

    vmem_limit = min(max(int(tile_budget(tm_eff) * 1.2), 32 * _MIB), vmem_cap)

    flops = (2 * m * in_features * n_pad
             + 2 * m * r_pad * n_pad
             + 2 * m * in_features * r_pad * (1 if hoist_s else grid_n))
    bytes_accessed = (m * in_features * x_bytes
                      + grid_m * (in_features * n_pad + r_pad * n_pad) * cd_bytes
                      + in_features * r_pad * cd_bytes
                      + n_pad * 4
                      + m * n_pad * out_bytes)
    cost = pl.CostEstimate(flops=int(flops), transcendentals=0,
                           bytes_accessed=int(bytes_accessed))

    in_specs = [
        pl.BlockSpec((tm_eff, in_features), lambda i, j: (i, 0)),   # x
        pl.BlockSpec((in_features, tn), lambda i, j: (0, j)),       # W0^T
        # bias is tiny (tn*4 B); keep default double-buffering rather than
        # putting a per-step DMA wait on the critical path.
        pl.BlockSpec((1, tn), lambda i, j: (0, j)),                 # bias
        _const_spec((in_features, r_pad), lambda i, j: (0, 0)),     # A*^T (resident)
        pl.BlockSpec((r_pad, tn), lambda i, j: (0, j)),             # B*^T
    ]
    scratch_shapes = ([pltpu.VMEM((tm_eff, r_pad), compute_dtype)]
                      if hoist_s else [])

    y2d = pl.pallas_call(
        _make_abba_kernel(compute_dtype, hoist_s),
        out_shape=jax.ShapeDtypeStruct((m, n_pad), x.dtype),
        grid_spec=pltpu.PrefetchScalarGridSpec(
            num_scalar_prefetch=0,
            grid=(grid_m, grid_n),
            in_specs=in_specs,
            out_specs=pl.BlockSpec((tm_eff, tn), lambda i, j: (i, j)),
            scratch_shapes=scratch_shapes,
        ),
        compiler_params=pltpu.CompilerParams(
            dimension_semantics=dims,
            vmem_limit_bytes=vmem_limit),
        cost_estimate=cost,
    )(x2d, w0_t, bias2d, astar_t, bstar_t)

    if n_pad != out_features:
        y2d = y2d[:, :out_features]
    return y2d.reshape(orig_shape[:-1] + (out_features,))


def abba_forward(x, w0, bias, a1, b1, a2, b2, alpha1, alpha2, *,
                 compute_dtype=jnp.bfloat16, tm=512, tn=None):
    """Convenience wrapper: prepare params (hoist this for repeated calls with
    static weights) then run the fused kernel."""
    params = prepare_abba_params(w0, bias, a1, b1, a2, b2, alpha1, alpha2,
                                 compute_dtype=compute_dtype)
    return abba_forward_prepared(x, *params, tm=tm, tn=tn)


def _reference(x, w0, bias, a1, b1, a2, b2, alpha1, alpha2):
    """Pure-JAX f32 reference mirroring the PyTorch forward."""
    s1 = jnp.sqrt(jnp.asarray(alpha1, jnp.float32))
    s2 = jnp.sqrt(jnp.asarray(alpha2, jnp.float32))
    out_features = w0.shape[0]
    r1 = b1.shape[1]
    r2 = b2.shape[1]
    B_star = ((b1 * s1)[:, :, None] * (b2 * s2)[:, None, :]
              ).reshape(out_features, r1 * r2)
    A_star = (a1[:, None, :] * a2[None, :, :]).reshape(r1 * r2, a1.shape[1])
    y = x @ w0.T + (0.0 if bias is None else bias)
    s = x @ A_star.T
    return y + s @ B_star.T


if __name__ == "__main__":
    # TODO(synk): SVD-based init (init_weights_svd_mixed / torch.svd_lowrank) is
    # checkpoint-style parameter setup, not part of the forward hot path; params
    # are initialized with deterministic random values instead.
    def make_case(key, batch, seq, in_features, out_features, r1, r2):
        ks = jax.random.split(key, 7)
        x = jax.random.normal(ks[0], (batch, seq, in_features), jnp.float32)
        w0 = jax.random.normal(ks[1], (out_features, in_features), jnp.float32) * 0.1
        bias = jax.random.normal(ks[2], (out_features,), jnp.float32) * 0.1
        a1 = jax.random.normal(ks[3], (r1, in_features), jnp.float32) * 0.1
        b1 = jax.random.normal(ks[4], (out_features, r1), jnp.float32) * 0.1
        a2 = jax.random.normal(ks[5], (r2, in_features), jnp.float32) * 0.1
        b2 = jax.random.normal(ks[6], (out_features, r2), jnp.float32) * 0.1
        return x, w0, bias, a1, b1, a2, b2

    key = jax.random.PRNGKey(0)
    k1, k2 = jax.random.split(key)
    alpha1, alpha2 = 8.0, 8.0

    # 1) Small shapes consistent with the module: Linear(32 -> 32), r1=r2=4,
    #    batch=2, seq=8.  bf16 compute, single-tile grid (un-hoisted path).
    x, w0, bias, a1, b1, a2, b2 = make_case(k1, 2, 8, 32, 32, 4, 4)
    params_bf16 = prepare_abba_params(w0, bias, a1, b1, a2, b2, alpha1, alpha2,
                                      compute_dtype=jnp.bfloat16)
    y = abba_forward_prepared(x, *params_bf16)
    jax.block_until_ready(y)
    y_ref = _reference(x, w0, bias, a1, b1, a2, b2, alpha1, alpha2)
    assert y.shape == y_ref.shape
    assert jnp.allclose(y, y_ref, atol=2e-2, rtol=2e-2), "case 1 (bf16) mismatch"

    # 2) f32 compute path with ragged M (M=10): exercises the masked boundary
    #    block (no host-side pad/cast of x).  MXU f32 is multi-pass bf16, so the
    #    tolerance is kept loose.
    x_odd = x[:, :5, :]
    params_f32 = prepare_abba_params(w0, bias, a1, b1, a2, b2, alpha1, alpha2,
                                     compute_dtype=jnp.float32)
    y2 = abba_forward_prepared(x_odd, *params_f32)
    jax.block_until_ready(y2)
    y2_ref = _reference(x_odd, w0, bias, a1, b1, a2, b2, alpha1, alpha2)
    assert jnp.allclose(y2, y2_ref, atol=2e-2, rtol=2e-2), "case 2 (f32 ragged) mismatch"

    # 3) Multi-tile grid (grid_m=2, grid_n=2): exercises the hoisted-s path with
    #    the VMEM scratch and ("parallel", "arbitrary") semantics.
    x3, w03, bias3, a13, b13, a23, b23 = make_case(k2, 2, 128, 64, 512, 4, 4)
    params3 = prepare_abba_params(w03, bias3, a13, b13, a23, b23, alpha1, alpha2,
                                  compute_dtype=jnp.bfloat16)
    y3 = abba_forward_prepared(x3, *params3, tm=128)
    jax.block_until_ready(y3)
    y3_ref = _reference(x3, w03, bias3, a13, b13, a23, b23, alpha1, alpha2)
    assert jnp.allclose(y3, y3_ref, atol=3e-2, rtol=3e-2), "case 3 (hoisted-s) mismatch"

    print("KERNEL_OK")
</pallas_src>

<mosaic_0001>
module attributes {stable_mosaic.version = 11 : i64} {
  func.func @kernel(%arg0: i32, %arg1: i32, %arg2: memref<16x32xf32, #tpu.memory_space<vmem>>, %arg3: memref<32x128xbf16, #tpu.memory_space<vmem>>, %arg4: memref<1x128xf32, #tpu.memory_space<vmem>>, %arg5: memref<32x128xbf16, #tpu.memory_space<vmem>>, %arg6: memref<128x128xbf16, #tpu.memory_space<vmem>>, %arg7: memref<16x128xf32, #tpu.memory_space<vmem>>) attributes {dimension_semantics = [#tpu.dimension_semantics<parallel>, #tpu.dimension_semantics<parallel>], iteration_bounds = array<i64: 1, 1>, scalar_prefetch = 0 : i64, scratch_operands = 0 : i64, tpu.core_type = #tpu.core_type<tc>, window_params = [{transform_indices = @transform_0, window_bounds = array<i64: 16, 32>}, {transform_indices = @transform_1, window_bounds = array<i64: 32, 128>}, {transform_indices = @transform_2, window_bounds = array<i64: 1, 128>}, {pipeline_mode = #tpu.pipeline_mode<synchronous>, transform_indices = @transform_3, window_bounds = array<i64: 32, 128>}, {transform_indices = @transform_4, window_bounds = array<i64: 128, 128>}, {transform_indices = @transform_5, window_bounds = array<i64: 16, 128>}]} {
    %c0 = arith.constant 0 : index
    %c0_0 = arith.constant 0 : index
    %0 = vector.load %arg2[%c0, %c0_0] : memref<16x32xf32, #tpu.memory_space<vmem>>, vector<16x32xf32>
    %1 = arith.truncf %0 : vector<16x32xf32> to vector<16x32xbf16>
    %c0_1 = arith.constant 0 : index
    %c0_2 = arith.constant 0 : index
    %2 = vector.load %arg5[%c0_1, %c0_2] : memref<32x128xbf16, #tpu.memory_space<vmem>>, vector<32x128xbf16>
    %cst = arith.constant dense<0.000000e+00> : vector<16x128xf32>
    %3 = tpu.matmul %1, %2, %cst {dimension_numbers = #tpu.dot_dimension_numbers<[1], [0], [0], [1], [0, 0, 1, 1], [], []>} : vector<16x32xbf16>, vector<32x128xbf16>, vector<16x128xf32> -> vector<16x128xf32>
    %c0_3 = arith.constant 0 : index
    %c0_4 = arith.constant 0 : index
    %4 = vector.load %arg3[%c0_3, %c0_4] : memref<32x128xbf16, #tpu.memory_space<vmem>>, vector<32x128xbf16>
    %cst_5 = arith.constant dense<0.000000e+00> : vector<16x128xf32>
    %5 = tpu.matmul %1, %4, %cst_5 {dimension_numbers = #tpu.dot_dimension_numbers<[1], [0], [0], [1], [0, 0, 1, 1], [], []>} : vector<16x32xbf16>, vector<32x128xbf16>, vector<16x128xf32> -> vector<16x128xf32>
    %6 = arith.truncf %3 : vector<16x128xf32> to vector<16x128xbf16>
    %c0_6 = arith.constant 0 : index
    %c0_7 = arith.constant 0 : index
    %7 = vector.load %arg6[%c0_6, %c0_7] : memref<128x128xbf16, #tpu.memory_space<vmem>>, vector<128x128xbf16>
    %cst_8 = arith.constant dense<0.000000e+00> : vector<16x128xf32>
    %8 = tpu.matmul %6, %7, %cst_8 {dimension_numbers = #tpu.dot_dimension_numbers<[1], [0], [0], [1], [0, 0, 1, 1], [], []>} : vector<16x128xbf16>, vector<128x128xbf16>, vector<16x128xf32> -> vector<16x128xf32>
    %9 = arith.addf %5, %8 : vector<16x128xf32>
    %c0_9 = arith.constant 0 : index
    %c0_10 = arith.constant 0 : index
    %10 = vector.load %arg4[%c0_9, %c0_10] : memref<1x128xf32, #tpu.memory_space<vmem>>, vector<1x128xf32>
    %11 = vector.broadcast %10 : vector<1x128xf32> to vector<16x128xf32>
    %12 = arith.addf %9, %11 : vector<16x128xf32>
    %c0_11 = arith.constant 0 : index
    %c0_12 = arith.constant 0 : index
    %13 = vector.load %arg7[%c0_11, %c0_12] : memref<16x128xf32, #tpu.memory_space<vmem>>, vector<16x128xf32>
    tpu.vector_store %arg7[%c0_11, %c0_12], %12 {strides = array<i32>} : memref<16x128xf32, #tpu.memory_space<vmem>>, vector<16x128xf32>,
    return
  }
  func.func @transform_0(%arg0: i32, %arg1: i32) -> (i32, i32) {
    %c0_i32 = arith.constant 0 : i32
    %c0_i32_0 = arith.constant 0 : i32
    return %arg0, %c0_i32 : i32, i32
  }
  func.func @transform_1(%arg0: i32, %arg1: i32) -> (i32, i32) {
    %c0_i32 = arith.constant 0 : i32
    %c0_i32_0 = arith.constant 0 : i32
    return %c0_i32, %arg1 : i32, i32
  }
  func.func @transform_2(%arg0: i32, %arg1: i32) -> (i32, i32) {
    %c0_i32 = arith.constant 0 : i32
    %c0_i32_0 = arith.constant 0 : i32
    return %c0_i32, %arg1 : i32, i32
  }
  func.func @transform_3(%arg0: i32, %arg1: i32) -> (i32, i32) {
    %c0_i32 = arith.constant 0 : i32
    %c0_i32_0 = arith.constant 0 : i32
    %c0_i32_1 = arith.constant 0 : i32
    return %c0_i32, %c0_i32_0 : i32, i32
  }
  func.func @transform_4(%arg0: i32, %arg1: i32) -> (i32, i32) {
    %c0_i32 = arith.constant 0 : i32
    %c0_i32_0 = arith.constant 0 : i32
    return %c0_i32, %arg1 : i32, i32
  }
  func.func @transform_5(%arg0: i32, %arg1: i32) -> (i32, i32) {
    %c0_i32 = arith.constant 0 : i32
    return %arg0, %arg1 : i32, i32
  }
}

</mosaic_0001>

<llo_original>
// kernel: tpu_custom_call.1
$region0: #{tpu_custom_call.1}
  #allocation0 [shape = 'u32[]', space=smem, size = 0x4, offset = 0x4, fixed_abs, tag = 'smem constant byte address 0x4 - core index']
  #allocation1 [shape = 'u32[144,128]{1,0:T(1,128)}', space=vmem, size = 0x12000, scoped, tag = 'internal scratch']
  %s0 = inlined_call_operand.hbm [shape: f32[16,32], index: 0, kind: input, shape index: {}]
  %s1 = inlined_call_operand.hbm [shape: bf16[32,128], index: 1, kind: input, shape index: {}]
  %s2 = inlined_call_operand.vmem [shape: f32[1,128], index: 2, kind: input, shape index: {}]
  %s3 = inlined_call_operand.hbm [shape: bf16[32,128], index: 3, kind: input, shape index: {}]
  %s4 = inlined_call_operand.hbm [shape: bf16[128,128], index: 4, kind: input, shape index: {}]
  %s5 = inlined_call_operand.hbm [shape: f32[16,128], index: 5, kind: output, shape index: {}]
  %s6 = sld [smem:[#allocation0]]
  $region46: #{tpu_custom_call.1} parent=0
    _
  %s8 = ssub.s32 1, %s6
  %s9 = scalar_select 0, %s8, %s6
  $region1: #{tpu_custom_call.1} parent=0
    #allocation2 [shape = 'u8[8192]{0}', space=vmem, size = 0x2000, scoped, tag = 'input window, operand 0, single buffered']
    #allocation3 [shape = 's32[1]{0}', space=sflag, size = 0x4, scoped, tag = 'scoped memory for tpu_custom_call.1']
    #allocation4 [shape = 's32[1]{0}', space=sflag, size = 0x4, scoped, tag = 'scoped memory for tpu_custom_call.1']
    #allocation5 [shape = 'u8[8192]{0}', space=vmem, size = 0x2000, scoped, tag = 'input window, operand 1, single buffered']
    #allocation6 [shape = 's32[1]{0}', space=sflag, size = 0x4, scoped, tag = 'scoped memory for tpu_custom_call.1']
    #allocation7 [shape = 'u8[8192]{0}', space=vmem, size = 0x2000, scoped, tag = 'input window, operand 3, single buffered']
    #allocation8 [shape = 'u8[32768]{0}', space=vmem, size = 0x8000, scoped, tag = 'input window, operand 4, single buffered']
    #allocation9 [shape = 's32[1]{0}', space=sflag, size = 0x4, scoped, tag = 'scoped memory for tpu_custom_call.1']
    #allocation10 [shape = 'u8[8192]{0}', space=vmem, size = 0x2000, scoped, tag = 'output window, operand 0, single buffered']
    %10 = vsyncpa [#allocation3], 0
    %11 = vsyncpa [#allocation6], 0
    %12 = vsyncpa [#allocation9], 0
    %13 = vsyncpa [#allocation4], 0
    // Predicated region
    $region2: #{tpu_custom_call.1} parent=1 // pred_check
      _
    $region3: #{tpu_custom_call.1} parent=1 // pred_check_branch
      %15 = sbr.rel (0) target = $region5
    $region4: #{tpu_custom_call.1} parent=1 // pred_region
      %s17 = ssub.s32 256, 256
      %18 = vsyncadd [#allocation3], %s17
      %s19 = sshll.u32 [#allocation2], 4
      %s20 = int_to_ptr.vmem [resolvable:$true] %s19
      %25 = dma.hbm_to_vmem [thread:$0]  %s0, 256, %s20, [#allocation3], 128, 128, 8
    $region5: #{tpu_custom_call.1} parent=1 // pred_fallthru
      _
    // Predicated region
    $region6: #{tpu_custom_call.1} parent=1 // pred_check
      _
    $region7: #{tpu_custom_call.1} parent=1 // pred_check_branch
      %27 = sbr.rel (0) target = $region9
    $region8: #{tpu_custom_call.1} parent=1 // pred_region
      %s29 = ssub.s32 256, 256
      %30 = vsyncadd [#allocation6], %s29
      %s31 = sshll.u32 [#allocation5], 4
      %s32 = int_to_ptr.vmem [resolvable:$true] %s31
      %37 = dma.hbm_to_vmem [thread:$0]  %s1, 256, %s32, [#allocation6], 64, 64, 4
    $region9: #{tpu_custom_call.1} parent=1 // pred_fallthru
      _
    // Predicated region
    $region10: #{tpu_custom_call.1} parent=1 // pred_check
      _
    $region11: #{tpu_custom_call.1} parent=1 // pred_check_branch
      %39 = sbr.rel (0) target = $region13
    $region12: #{tpu_custom_call.1} parent=1 // pred_region
      _
    $region13: #{tpu_custom_call.1} parent=1 // pred_fallthru
      _
    // Predicated region
    $region14: #{tpu_custom_call.1} parent=1 // pred_check
      _
    $region15: #{tpu_custom_call.1} parent=1 // pred_check_branch
      %41 = sbr.rel (0) target = $region17
    $region16: #{tpu_custom_call.1} parent=1 // pred_region
      %s43 = ssub.s32 256, 256
      %44 = vsyncadd [#allocation6], %s43
      %s45 = sshll.u32 [#allocation7], 4
      %s46 = int_to_ptr.vmem [resolvable:$true] %s45
      %51 = dma.hbm_to_vmem [thread:$0]  %s3, 256, %s46, [#allocation6], 64, 64, 4
    $region17: #{tpu_custom_call.1} parent=1 // pred_fallthru
      _
    // Predicated region
    $region18: #{tpu_custom_call.1} parent=1 // pred_check
      _
    $region19: #{tpu_custom_call.1} parent=1 // pred_check_branch
      %53 = sbr.rel (0) target = $region21
    $region20: #{tpu_custom_call.1} parent=1 // pred_region
      %s55 = ssub.s32 1024, 1024
      %56 = vsyncadd [#allocation9], %s55
      %s57 = sshll.u32 [#allocation8], 4
      %s58 = int_to_ptr.vmem [resolvable:$true] %s57
      %63 = dma.hbm_to_vmem [thread:$0]  %s4, 1024, %s58, [#allocation9], 64, 64, 4
    $region21: #{tpu_custom_call.1} parent=1 // pred_fallthru
      _
    // Predicated region
    $region22: #{tpu_custom_call.1} parent=1 // pred_check
      _
    $region23: #{tpu_custom_call.1} parent=1 // pred_check_branch
      %65 = sbr.rel (0) target = $region25
    $region24: #{tpu_custom_call.1} parent=1 // pred_region
      %66 = dma.done [#allocation3], 256
    $region25: #{tpu_custom_call.1} parent=1 // pred_fallthru
      _
    // Predicated region
    $region26: #{tpu_custom_call.1} parent=1 // pred_check
      _
    $region27: #{tpu_custom_call.1} parent=1 // pred_check_branch
      %68 = sbr.rel (0) target = $region29
    $region28: #{tpu_custom_call.1} parent=1 // pred_region
      %69 = dma.done [#allocation6], 256
    $region29: #{tpu_custom_call.1} parent=1 // pred_fallthru
      _
    // Predicated region
    $region30: #{tpu_custom_call.1} parent=1 // pred_check
      _
    $region31: #{tpu_custom_call.1} parent=1 // pred_check_branch
      %71 = sbr.rel (0) target = $region33
    $region32: #{tpu_custom_call.1} parent=1 // pred_region
      %72 = dma.done [#allocation6], 256
    $region33: #{tpu_custom_call.1} parent=1 // pred_fallthru
      _
    // Predicated region
    $region34: #{tpu_custom_call.1} parent=1 // pred_check
      _
    $region35: #{tpu_custom_call.1} parent=1 // pred_check_branch
      %74 = sbr.rel (0) target = $region37
    $region36: #{tpu_custom_call.1} parent=1 // pred_region
      %75 = dma.done [#allocation9], 1024
    $region37: #{tpu_custom_call.1} parent=1 // pred_fallthru
      _
    %v77 = vld [vmem:[#allocation2] sm:$0xff]
    %v78 = vld [vmem:[#allocation2 + $0x8] sm:$0xff]
    %v79 = vpack.c.bf16 %v78, %v77
    %v80 = vld [vmem:[#allocation7] sm:$0xf]
    %v81 = vld [vmem:[#allocation7 + $0x4] sm:$0xf]
    %v82 = vld [vmem:[#allocation7 + $0x8] sm:$0xf]
    %v83 = vld [vmem:[#allocation7 + $0xc] sm:$0xf]
    %v88 = vunpack.c.l.b16 %v80
    %v89 = vunpack.c.l.b16 %v81
    %v90 = vunpack.c.l.b16 %v82
    %v91 = vunpack.c.l.b16 %v83
    %v92 = vpack.c.b16 %v89, %v88
    %v93 = vpack.c.b16 %v91, %v90
    %vm96 = vcmask 261120
    %v98 = vsel %vm96, %v79, 0
    %100 = vmatprep.subr.bf16.mxu0 0
    %101 = vmatpush1.bf16.msra.mxu0 %v92
    %102 = vmatprep.subr.bf16.mxu0 0
    %103 = vmatpush1.bf16.msra.mxu0 %v93
    %104 = vmatprep.subr.bf16.mxu0 0
    %105 = vmatpush1.bf16.msra.mxu0 0
    %106 = vmatprep.subr.bf16.mxu0 0
    %107 = vmatpush1.bf16.msra.mxu0 0
    %108 = vmatprep.subr.bf16.mxu0 0
    %109 = vmatpush1.bf16.msra.mxu0 0
    %110 = vmatprep.subr.bf16.mxu0 0
    %111 = vmatpush1.bf16.msra.mxu0 0
    %112 = vmatprep.subr.bf16.mxu0 0
    %113 = vmatpush1.bf16.msra.mxu0 0
    %114 = vmatprep.subr.bf16.mxu0 0
    %115 = vmatpush1.bf16.msra.mxu0 0
    %116 = vmatprep.subr.bf16.mxu0 0
    %117 = vmatpush1.bf16.msra.mxu0 0
    %118 = vmatprep.subr.bf16.mxu0 0
    %119 = vmatpush1.bf16.msra.mxu0 0
    %120 = vmatprep.subr.bf16.mxu0 0
    %121 = vmatpush1.bf16.msra.mxu0 0
    %122 = vmatprep.subr.bf16.mxu0 0
    %123 = vmatpush1.bf16.msra.mxu0 0
    %124 = vmatprep.subr.bf16.mxu0 0
    %125 = vmatpush1.bf16.msra.mxu0 0
    %126 = vmatprep.subr.bf16.mxu0 0
    %127 = vmatpush1.bf16.msra.mxu0 0
    %128 = vmatprep.subr.bf16.mxu0 0
    %129 = vmatpush1.bf16.msra.mxu0 0
    %130 = vmatprep.subr.bf16.mxu0 0
    %131 = vmatpush1.bf16.msra.mxu0 0
    %132 = vmatprep.mubr.bf16.mxu0 0
    %133 = vmatmul.mubr.bf16.gmra.mrb[0].mxu0 %v98
    %v134 = vpop.f32.mrb[0].mxu0
    %v135 = vadd.f32 0.0, %v134
    %v136 = vpop.f32.mrb[0].mxu0
    %v137 = vpop.f32.mrb[0].mxu0
    %v138 = vadd.f32 0.0, %v137
    %v139 = vpop.f32.mrb[0].mxu0
    %140 = vdwg.mxu0
    %v141 = vld [vmem:[#allocation5] sm:$0xf]
    %v142 = vld [vmem:[#allocation5 + $0x4] sm:$0xf]
    %v143 = vld [vmem:[#allocation5 + $0x8] sm:$0xf]
    %v144 = vld [vmem:[#allocation5 + $0xc] sm:$0xf]
    %v145 = vpack.c.bf16 %v138, %v135
    %v146 = vld [vmem:[#allocation8] sm:$0xf]
    %v147 = vld [vmem:[#allocation8 + $0x4] sm:$0xf]
    %v148 = vld [vmem:[#allocation8 + $0x8] sm:$0xf]
    %v149 = vld [vmem:[#allocation8 + $0xc] sm:$0xf]
    %v150 = vld [vmem:[#allocation8 + $0x10] sm:$0xf]
    %v151 = vld [vmem:[#allocation8 + $0x14] sm:$0xf]
    %v152 = vld [vmem:[#allocation8 + $0x18] sm:$0xf]
    %v153 = vld [vmem:[#allocation8 + $0x1c] sm:$0xf]
    %v154 = vld [vmem:[#allocation8 + $0x20] sm:$0xf]
    %v155 = vld [vmem:[#allocation8 + $0x24] sm:$0xf]
    %v156 = vld [vmem:[#allocation8 + $0x28] sm:$0xf]
    %v157 = vld [vmem:[#allocation8 + $0x2c] sm:$0xf]
    %v158 = vld [vmem:[#allocation8 + $0x30] sm:$0xf]
    %v159 = vld [vmem:[#allocation8 + $0x34] sm:$0xf]
    %v160 = vld [vmem:[#allocation8 + $0x38] sm:$0xf]
    %v161 = vld [vmem:[#allocation8 + $0x3c] sm:$0xf]
    %v178 = vunpack.c.l.b16 %v146
    %v179 = vunpack.c.l.b16 %v147
    %v180 = vunpack.c.l.b16 %v148
    %v181 = vunpack.c.l.b16 %v149
    %v182 = vunpack.c.l.b16 %v150
    %v183 = vunpack.c.l.b16 %v151
    %v184 = vunpack.c.l.b16 %v152
    %v185 = vunpack.c.l.b16 %v153
    %v186 = vunpack.c.l.b16 %v154
    %v187 = vunpack.c.l.b16 %v155
    %v188 = vunpack.c.l.b16 %v156
    %v189 = vunpack.c.l.b16 %v157
    %v190 = vunpack.c.l.b16 %v158
    %v191 = vunpack.c.l.b16 %v159
    %v192 = vunpack.c.l.b16 %v160
    %v193 = vunpack.c.l.b16 %v161
    %v194 = vpack.c.b16 %v179, %v178
    %v195 = vpack.c.b16 %v181, %v180
    %v196 = vpack.c.b16 %v183, %v182
    %v197 = vpack.c.b16 %v185, %v184
    %v198 = vpack.c.b16 %v187, %v186
    %v199 = vpack.c.b16 %v189, %v188
    %v200 = vpack.c.b16 %v191, %v190
    %v201 = vpack.c.b16 %v193, %v192
    %210 = vmatprep.subr.bf16.mxu0 0
    %211 = vmatpush1.bf16.msra.mxu0 %v194
    %212 = vmatprep.subr.bf16.mxu0 0
    %213 = vmatpush1.bf16.msra.mxu0 %v195
    %214 = vmatprep.subr.bf16.mxu0 0
    %215 = vmatpush1.bf16.msra.mxu0 %v196
    %216 = vmatprep.subr.bf16.mxu0 0
    %217 = vmatpush1.bf16.msra.mxu0 %v197
    %218 = vmatprep.subr.bf16.mxu0 0
    %219 = vmatpush1.bf16.msra.mxu0 %v198
    %220 = vmatprep.subr.bf16.mxu0 0
    %221 = vmatpush1.bf16.msra.mxu0 %v199
    %222 = vmatprep.subr.bf16.mxu0 0
    %223 = vmatpush1.bf16.msra.mxu0 %v200
    %224 = vmatprep.subr.bf16.mxu0 0
    %225 = vmatpush1.bf16.msra.mxu0 %v201
    %226 = vmatprep.subr.bf16.mxu0 0
    %227 = vmatpush1.bf16.msra.mxu0 0
    %228 = vmatprep.subr.bf16.mxu0 0
    %229 = vmatpush1.bf16.msra.mxu0 0
    %230 = vmatprep.subr.bf16.mxu0 0
    %231 = vmatpush1.bf16.msra.mxu0 0
    %232 = vmatprep.subr.bf16.mxu0 0
    %233 = vmatpush1.bf16.msra.mxu0 0
    %234 = vmatprep.subr.bf16.mxu0 0
    %235 = vmatpush1.bf16.msra.mxu0 0
    %236 = vmatprep.subr.bf16.mxu0 0
    %237 = vmatpush1.bf16.msra.mxu0 0
    %238 = vmatprep.subr.bf16.mxu0 0
    %239 = vmatpush1.bf16.msra.mxu0 0
    %240 = vmatprep.subr.bf16.mxu0 0
    %241 = vmatpush1.bf16.msra.mxu0 0
    %242 = vmatprep.mubr.bf16.mxu0 0
    %243 = vmatmul.mubr.bf16.gmra.mrb[0].mxu0 %v145
    %v244 = vpop.f32.mrb[0].mxu0
    %v245 = vadd.f32 0.0, %v244
    %v246 = vpop.f32.mrb[0].mxu0
    %v247 = vpop.f32.mrb[0].mxu0
    %v248 = vadd.f32 0.0, %v247
    %v249 = vpop.f32.mrb[0].mxu0
    %250 = vdwg.mxu0
    %v255 = vunpack.c.l.b16 %v141
    %v256 = vunpack.c.l.b16 %v142
    %v257 = vunpack.c.l.b16 %v143
    %v258 = vunpack.c.l.b16 %v144
    %v259 = vpack.c.b16 %v256, %v255
    %v260 = vpack.c.b16 %v258, %v257
    %263 = vmatprep.subr.bf16.mxu0 0
    %264 = vmatpush1.bf16.msra.mxu0 %v259
    %265 = vmatprep.subr.bf16.mxu0 0
    %266 = vmatpush1.bf16.msra.mxu0 %v260
    %267 = vmatprep.subr.bf16.mxu0 0
    %268 = vmatpush1.bf16.msra.mxu0 0
    %269 = vmatprep.subr.bf16.mxu0 0
    %270 = vmatpush1.bf16.msra.mxu0 0
    %271 = vmatprep.subr.bf16.mxu0 0
    %272 = vmatpush1.bf16.msra.mxu0 0
    %273 = vmatprep.subr.bf16.mxu0 0
    %274 = vmatpush1.bf16.msra.mxu0 0
    %275 = vmatprep.subr.bf16.mxu0 0
    %276 = vmatpush1.bf16.msra.mxu0 0
    %277 = vmatprep.subr.bf16.mxu0 0
    %278 = vmatpush1.bf16.msra.mxu0 0
    %279 = vmatprep.subr.bf16.mxu0 0
    %280 = vmatpush1.bf16.msra.mxu0 0
    %281 = vmatprep.subr.bf16.mxu0 0
    %282 = vmatpush1.bf16.msra.mxu0 0
    %283 = vmatprep.subr.bf16.mxu0 0
    %284 = vmatpush1.bf16.msra.mxu0 0
    %285 = vmatprep.subr.bf16.mxu0 0
    %286 = vmatpush1.bf16.msra.mxu0 0
    %287 = vmatprep.subr.bf16.mxu0 0
    %288 = vmatpush1.bf16.msra.mxu0 0
    %289 = vmatprep.subr.bf16.mxu0 0
    %290 = vmatpush1.bf16.msra.mxu0 0
    %291 = vmatprep.subr.bf16.mxu0 0
    %292 = vmatpush1.bf16.msra.mxu0 0
    %293 = vmatprep.subr.bf16.mxu0 0
    %294 = vmatpush1.bf16.msra.mxu0 0
    %295 = vmatprep.mubr.bf16.mxu0 0
    %296 = vmatmul.mubr.bf16.gmra.mrb[0].mxu0 %v98
    %v297 = vpop.f32.mrb[0].mxu0
    %v298 = vadd.f32 %v245, %v297
    %v299 = vpop.f32.mrb[0].mxu0
    %v300 = vpop.f32.mrb[0].mxu0
    %v301 = vadd.f32 %v248, %v300
    %v302 = vpop.f32.mrb[0].mxu0
    %303 = vdwg.mxu0
    %v304 = vld [vmem:[%s2] sm:$0x1]
    %v306 = vlaneseq
    %v307 = vshrl.u32 %v306, 7
    %v308 = vsub.s32 0, %v307
    %v309 = vrot.slane %v304, %v308
    %v311 = vadd.f32 %v298, %v309
    %v312 = vadd.f32 %v301, %v309
    %313 = vst [vmem:[#allocation10] sm:$0xff] %v311
    %314 = vst [vmem:[#allocation10 + $0x8] sm:$0xff] %v312
    // Predicated region
    $region38: #{tpu_custom_call.1} parent=1 // pred_check
      _
    $region39: #{tpu_custom_call.1} parent=1 // pred_check_branch
      %316 = sbr.rel (0) target = $region41
    $region40: #{tpu_custom_call.1} parent=1 // pred_region
      %s318 = ssub.s32 256, 256
      %319 = vsyncadd [#allocation4], %s318
      %s320 = sshll.u32 [#allocation10], 4
      %s321 = int_to_ptr.vmem [resolvable:$true] %s320
      %326 = dma.vmem_to_hbm [thread:$0]  %s321, 256, %s5, [#allocation4], 128, 128, 8
    $region41: #{tpu_custom_call.1} parent=1 // pred_fallthru
      _
    // Predicated region
    $region42: #{tpu_custom_call.1} parent=1 // pred_check
      _
    $region43: #{tpu_custom_call.1} parent=1 // pred_check_branch
      %328 = sbr.rel (0) target = $region45
    $region44: #{tpu_custom_call.1} parent=1 // pred_region
      %329 = dma.done [#allocation4], 256
    $region45: #{tpu_custom_call.1} parent=1 // pred_fallthru
      _
    %330 = vsyncpa [#allocation3], 1
    %331 = vsyncpa [#allocation6], 1
    %332 = vsyncpa [#allocation9], 1
    %333 = vsyncpa [#allocation4], 1

</llo_original>
